<compile_context>
chip_gen: v7x
topology: tpu7x:2x2x1
jax: 0.10.0
libtpu: 0.0.40
codegen_flags: <defaults>
</compile_context>

<pallas_src>
import jax
import jax.numpy as jnp
from jax.experimental import pallas as pl
from jax.experimental.pallas import tpu as pltpu


def _glu_kernel(x_ref, w12_ref, b12_ref, w3_ref, b3_ref, o_ref):
    # x_ref / o_ref : (C, TILE_S) spatial tile, lane-dense along the spatial axis.
    # w12_ref       : (2C, C) bf16  -- conv1 and conv2 weights stacked on rows.
    # b12_ref       : (2C, 1) f32   -- conv1/conv2 biases stacked.
    # w3_ref        : (C, C)  bf16;  b3_ref: (C, 1) f32.
    C = o_ref.shape[0]

    x = x_ref[...].astype(jnp.bfloat16)  # MXU operand; accumulate in f32 below.

    # Fused conv1 + conv2: a single fat matmul fills more MXU rows at small C.
    y12 = jnp.dot(w12_ref[...], x, preferred_element_type=jnp.float32) + b12_ref[...]
    y1 = y12[:C, :]
    y2 = y12[C:, :]

    # Gate stays f32 (v5e VPU/EUP have no bf16); sigmoid goes to the EUP slot.
    g = y1 * jax.nn.sigmoid(y2)

    # TODO(synk): nn.Dropout is identity in eval mode; training-mode dropout
    # would need pltpu.prng_seed/prng_random_bits masking with 1/(1-p) rescale.

    out = jnp.dot(w3_ref[...], g.astype(jnp.bfloat16),
                  preferred_element_type=jnp.float32) + b3_ref[...]
    o_ref[...] = out.astype(o_ref.dtype)


def glu_pallas(x, w1, b1, w2, b2, w3, b3, *, tile_s=1024):
    """GLU forward for NCHW input x and PyTorch-style 1x1 conv params.

    x: [B, C, H, W];  w*: [C, C, 1, 1];  b*: [C].
    """
    B, C, H, W = x.shape
    S = H * W

    # Free reshape: NCHW -> (B, C, S) keeps memory layout, spatial axis last.
    x3 = x.reshape(B, C, S)

    # Tile selection: full-extent block if it fits, else a multiple of 128
    # (lane-dense); a ragged last block is handled by Pallas (masked stores).
    if tile_s >= S:
        tile_s = S
    else:
        tile_s = max(128, (tile_s // 128) * 128)
    n_s = pl.cdiv(S, tile_s)

    # 1x1 conv weights -> (C_out, C_in) matrices, conv1/conv2 stacked on rows.
    # Pre-cast to bf16 ONCE here (they stay resident in VMEM across the grid).
    w12 = jnp.concatenate([w1.reshape(C, C), w2.reshape(C, C)], axis=0).astype(jnp.bfloat16)
    w3m = w3.reshape(C, C).astype(jnp.bfloat16)
    b12 = jnp.concatenate([b1, b2], axis=0).reshape(2 * C, 1).astype(jnp.float32)
    b3c = b3.reshape(C, 1).astype(jnp.float32)

    xo_spec = pl.BlockSpec((None, C, tile_s), lambda b, s: (b, 0, s))
    w12_spec = pl.BlockSpec((2 * C, C), lambda b, s: (0, 0))  # resident across grid
    b12_spec = pl.BlockSpec((2 * C, 1), lambda b, s: (0, 0))
    w3_spec = pl.BlockSpec((C, C), lambda b, s: (0, 0))
    b3_spec = pl.BlockSpec((C, 1), lambda b, s: (0, 0))

    cost = pl.CostEstimate(
        flops=6 * B * S * C * C,                 # (2C,C)@(C,S) + (C,C)@(C,S)
        transcendentals=B * S * C,               # sigmoid
        bytes_accessed=8 * B * C * S + 2 * 3 * C * C + 4 * 3 * C,
    )

    out3 = pl.pallas_call(
        _glu_kernel,
        out_shape=jax.ShapeDtypeStruct((B, C, S), x.dtype),
        grid_spec=pltpu.PrefetchScalarGridSpec(
            num_scalar_prefetch=0,
            grid=(B, n_s),
            in_specs=[xo_spec, w12_spec, b12_spec, w3_spec, b3_spec],
            out_specs=xo_spec,
        ),
        compiler_params=pltpu.CompilerParams(
            dimension_semantics=("parallel", "parallel"),
            vmem_limit_bytes=32 * 1024 * 1024,
        ),
        cost_estimate=cost,
    )(x3, w12, b12, w3m, b3c)

    return out3.reshape(B, C, H, W)


def glu_ref(x, w1, b1, w2, b2, w3, b3, *, matmul_dtype=jnp.float32):
    """Pure-JAX reference matching the PyTorch module (eval mode).

    matmul_dtype=bfloat16 mirrors the kernel's MXU operand precision
    (f32 accumulation) for a tight apples-to-apples check.
    """
    C = x.shape[1]

    def conv1x1(v, w, b):
        y = jnp.einsum("oc,bchw->bohw",
                       w.reshape(C, C).astype(matmul_dtype),
                       v.astype(matmul_dtype),
                       preferred_element_type=jnp.float32)
        return y + b[None, :, None, None]

    y1 = conv1x1(x, w1, b1)
    y2 = conv1x1(x, w2, b2)
    g = y1 * jax.nn.sigmoid(y2)
    return conv1x1(g, w3, b3)


if __name__ == "__main__":
    key = jax.random.PRNGKey(0)
    k_x, k1, k2, k3, kb1, kb2, kb3 = jax.random.split(key, 7)

    # Small shapes consistent with the module: batch=2, features=32, 16x16 grid.
    B, C, H, W = 2, 32, 16, 16
    scale = 1.0 / jnp.sqrt(jnp.float32(C))

    x = jax.random.normal(k_x, (B, C, H, W), dtype=jnp.float32)
    w1 = jax.random.normal(k1, (C, C, 1, 1), dtype=jnp.float32) * scale
    w2 = jax.random.normal(k2, (C, C, 1, 1), dtype=jnp.float32) * scale
    w3 = jax.random.normal(k3, (C, C, 1, 1), dtype=jnp.float32) * scale
    b1 = jax.random.normal(kb1, (C,), dtype=jnp.float32) * 0.1
    b2 = jax.random.normal(kb2, (C,), dtype=jnp.float32) * 0.1
    b3 = jax.random.normal(kb3, (C,), dtype=jnp.float32) * 0.1

    out = glu_pallas(x, w1, b1, w2, b2, w3, b3)
    out = jax.block_until_ready(out)
    assert out.shape == x.shape

    # Tight check vs a reference that mirrors the kernel's bf16-operand /
    # f32-accumulate matmuls (validates kernel logic).
    ref_mirror = glu_ref(x, w1, b1, w2, b2, w3, b3, matmul_dtype=jnp.bfloat16)
    assert jnp.allclose(out, ref_mirror, atol=1e-3, rtol=1e-3), "mismatch vs bf16-mirror reference"

    # Looser check vs the full-f32 module semantics (validates that the bf16
    # MXU-operand quantization, ~1e-3 relative, stays within budget).
    ref_f32 = glu_ref(x, w1, b1, w2, b2, w3, b3)
    assert jnp.allclose(out, ref_f32, atol=5e-2, rtol=5e-2), "mismatch vs f32 reference"

    print("KERNEL_OK")
</pallas_src>

<mosaic_0001>
module attributes {stable_mosaic.version = 11 : i64} {
  func.func @_glu_kernel(%arg0: i32, %arg1: i32, %arg2: memref<1x32x256xf32, #tpu.memory_space<vmem>>, %arg3: memref<64x32xbf16, #tpu.memory_space<vmem>>, %arg4: memref<64x1xf32, #tpu.memory_space<vmem>>, %arg5: memref<32x32xbf16, #tpu.memory_space<vmem>>, %arg6: memref<32x1xf32, #tpu.memory_space<vmem>>, %arg7: memref<1x32x256xf32, #tpu.memory_space<vmem>>) attributes {dimension_semantics = [#tpu.dimension_semantics<parallel>, #tpu.dimension_semantics<parallel>], iteration_bounds = array<i64: 2, 1>, scalar_prefetch = 0 : i64, scratch_operands = 0 : i64, tpu.core_type = #tpu.core_type<tc>, window_params = [{transform_indices = @transform_0, window_bounds = array<i64: 1, 32, 256>}, {pipeline_mode = #tpu.pipeline_mode<synchronous>, transform_indices = @transform_1, window_bounds = array<i64: 64, 32>}, {pipeline_mode = #tpu.pipeline_mode<synchronous>, transform_indices = @transform_2, window_bounds = array<i64: 64, 1>}, {pipeline_mode = #tpu.pipeline_mode<synchronous>, transform_indices = @transform_3, window_bounds = array<i64: 32, 32>}, {pipeline_mode = #tpu.pipeline_mode<synchronous>, transform_indices = @transform_4, window_bounds = array<i64: 32, 1>}, {transform_indices = @transform_5, window_bounds = array<i64: 1, 32, 256>}]} {
    %c0 = arith.constant 0 : index
    %c0_0 = arith.constant 0 : index
    %c0_1 = arith.constant 0 : index
    %0 = vector.load %arg2[%c0, %c0_0, %c0_1] : memref<1x32x256xf32, #tpu.memory_space<vmem>>, vector<1x32x256xf32>
    %1 = vector.shape_cast %0 : vector<1x32x256xf32> to vector<32x256xf32>
    %2 = arith.truncf %1 : vector<32x256xf32> to vector<32x256xbf16>
    %c0_2 = arith.constant 0 : index
    %c0_3 = arith.constant 0 : index
    %3 = vector.load %arg3[%c0_2, %c0_3] : memref<64x32xbf16, #tpu.memory_space<vmem>>, vector<64x32xbf16>
    %cst = arith.constant dense<0.000000e+00> : vector<64x256xf32>
    %4 = tpu.matmul %3, %2, %cst {dimension_numbers = #tpu.dot_dimension_numbers<[1], [0], [0], [1], [0, 0, 1, 1], [], []>} : vector<64x32xbf16>, vector<32x256xbf16>, vector<64x256xf32> -> vector<64x256xf32>
    %c0_4 = arith.constant 0 : index
    %c0_5 = arith.constant 0 : index
    %5 = vector.load %arg4[%c0_4, %c0_5] : memref<64x1xf32, #tpu.memory_space<vmem>>, vector<64x1xf32>
    %6 = vector.broadcast %5 : vector<64x1xf32> to vector<64x256xf32>
    %7 = arith.addf %4, %6 : vector<64x256xf32>
    %8 = vector.extract_strided_slice %7 {offsets = [0, 0], sizes = [32, 256], strides = [1, 1]} : vector<64x256xf32> to vector<32x256xf32>
    %9 = vector.extract_strided_slice %7 {offsets = [32, 0], sizes = [32, 256], strides = [1, 1]} : vector<64x256xf32> to vector<32x256xf32>
    %10 = arith.negf %9 : vector<32x256xf32>
    %11 = math.exp %10 : vector<32x256xf32>
    %cst_6 = arith.constant 1.000000e+00 : f32
    %12 = vector.broadcast %cst_6 : f32 to vector<32x256xf32>
    %13 = arith.addf %12, %11 : vector<32x256xf32>
    %14 = arith.divf %12, %13 : vector<32x256xf32>
    %15 = arith.mulf %8, %14 : vector<32x256xf32>
    %c0_7 = arith.constant 0 : index
    %c0_8 = arith.constant 0 : index
    %16 = vector.load %arg5[%c0_7, %c0_8] : memref<32x32xbf16, #tpu.memory_space<vmem>>, vector<32x32xbf16>
    %17 = arith.truncf %15 : vector<32x256xf32> to vector<32x256xbf16>
    %cst_9 = arith.constant dense<0.000000e+00> : vector<32x256xf32>
    %18 = tpu.matmul %16, %17, %cst_9 {dimension_numbers = #tpu.dot_dimension_numbers<[1], [0], [0], [1], [0, 0, 1, 1], [], []>} : vector<32x32xbf16>, vector<32x256xbf16>, vector<32x256xf32> -> vector<32x256xf32>
    %c0_10 = arith.constant 0 : index
    %c0_11 = arith.constant 0 : index
    %19 = vector.load %arg6[%c0_10, %c0_11] : memref<32x1xf32, #tpu.memory_space<vmem>>, vector<32x1xf32>
    %20 = vector.broadcast %19 : vector<32x1xf32> to vector<32x256xf32>
    %21 = arith.addf %18, %20 : vector<32x256xf32>
    %c0_12 = arith.constant 0 : index
    %c0_13 = arith.constant 0 : index
    %c0_14 = arith.constant 0 : index
    %22 = vector.load %arg7[%c0_12, %c0_13, %c0_14] : memref<1x32x256xf32, #tpu.memory_space<vmem>>, vector<1x32x256xf32>
    %23 = vector.shape_cast %22 : vector<1x32x256xf32> to vector<32x256xf32>
    %24 = vector.shape_cast %21 : vector<32x256xf32> to vector<1x32x256xf32>
    tpu.vector_store %arg7[%c0_12, %c0_13, %c0_14], %24 {strides = array<i32>} : memref<1x32x256xf32, #tpu.memory_space<vmem>>, vector<1x32x256xf32>,
    return
  }
  func.func @transform_0(%arg0: i32, %arg1: i32) -> (i32, i32, i32) {
    %c0_i32 = arith.constant 0 : i32
    %c0_i32_0 = arith.constant 0 : i32
    return %arg0, %c0_i32, %arg1 : i32, i32, i32
  }
  func.func @transform_1(%arg0: i32, %arg1: i32) -> (i32, i32) {
    %c0_i32 = arith.constant 0 : i32
    %c0_i32_0 = arith.constant 0 : i32
    %c0_i32_1 = arith.constant 0 : i32
    return %c0_i32, %c0_i32_0 : i32, i32
  }
  func.func @transform_2(%arg0: i32, %arg1: i32) -> (i32, i32) {
    %c0_i32 = arith.constant 0 : i32
    %c0_i32_0 = arith.constant 0 : i32
    %c0_i32_1 = arith.constant 0 : i32
    return %c0_i32, %c0_i32_0 : i32, i32
  }
  func.func @transform_3(%arg0: i32, %arg1: i32) -> (i32, i32) {
    %c0_i32 = arith.constant 0 : i32
    %c0_i32_0 = arith.constant 0 : i32
    %c0_i32_1 = arith.constant 0 : i32
    return %c0_i32, %c0_i32_0 : i32, i32
  }
  func.func @transform_4(%arg0: i32, %arg1: i32) -> (i32, i32) {
    %c0_i32 = arith.constant 0 : i32
    %c0_i32_0 = arith.constant 0 : i32
    %c0_i32_1 = arith.constant 0 : i32
    return %c0_i32, %c0_i32_0 : i32, i32
  }
  func.func @transform_5(%arg0: i32, %arg1: i32) -> (i32, i32, i32) {
    %c0_i32 = arith.constant 0 : i32
    %c0_i32_0 = arith.constant 0 : i32
    return %arg0, %c0_i32, %arg1 : i32, i32, i32
  }
}

</mosaic_0001>

<llo_original>
// kernel: tpu_custom_call.1
$region0: #{tpu_custom_call.1}
  #allocation0 [shape = 'u32[]', space=smem, size = 0x4, offset = 0x4, fixed_abs, tag = 'smem constant byte address 0x4 - core index']
  #allocation1 [shape = 'u32[144,128]{1,0:T(1,128)}', space=vmem, size = 0x12000, scoped, tag = 'internal scratch']
  %s0 = inlined_call_operand.vmem [shape: f32[2,32,256], index: 0, kind: input, shape index: {}]
  %s1 = inlined_call_operand.vmem [shape: bf16[64,32], index: 1, kind: input, shape index: {}]
  %s2 = inlined_call_operand.vmem [shape: f32[64,1], index: 2, kind: input, shape index: {}]
  %s3 = inlined_call_operand.vmem [shape: bf16[32,32], index: 3, kind: input, shape index: {}]
  %s4 = inlined_call_operand.vmem [shape: f32[32,1], index: 4, kind: input, shape index: {}]
  %s5 = inlined_call_operand.hbm [shape: f32[2,32,256], index: 5, kind: output, shape index: {}]
  %s6 = sld [smem:[#allocation0]]
  $region53: #{tpu_custom_call.1} parent=0
    _
  %s8 = ssub.s32 1, %s6
  %s9 = scalar_select 0, %s8, %s6
  $region1: #{tpu_custom_call.1} parent=0
    #allocation2 [shape = 'u8[65536]{0}', space=vmem, size = 0x10000, scoped, tag = 'output window, operand 0']
    #allocation3 [shape = 's32[2]{0}', space=sflag, size = 0x8, scoped, tag = 'scoped memory for tpu_custom_call.1']
    %10 = vsyncpa [#allocation3], 0
    %s11 = scalar_lea.sflag [#allocation3], 1
    %12 = vsyncpa %s11, 0
    loop: start=0, step=1, limit=4
    $region2: #{tpu_custom_call.1} parent=1 // loop_pre_header
      _
    $region3: #{tpu_custom_call.1} parent=1 // loop_header
      %s14 = sphi 0, %s18
      %p15 = scmp.ge.s32.totalorder %s14, 4
      %s21 = sphi 0, %s33
      %s22 = sphi 0, %s29
      %s23 = sphi 0, %s21
      %s24 = sphi 0, %s22
      %s25 = sphi 0, %s23
      %s26 = sphi 0, %s24
      %s38 = sphi 0, %s40
      %s41 = sphi 0, %s38
      %s42 = sphi 0, %s41
      %s58 = sphi 0, %s42
      %s62 = sphi 0, %s62
      %s64 = sphi 0, %s62
      %s65 = sphi 0, %s64
      %s79 = sphi 0, %s65
      %s83 = sphi 0, %s83
      %s85 = sphi 0, %s83
      %s86 = sphi 0, %s85
      %s100 = sphi 0, %s86
      %s104 = sphi 0, %s104
      %s106 = sphi 0, %s104
      %s107 = sphi 0, %s106
      %s121 = sphi 0, %s107
      %s125 = sphi 0, %s125
      %s127 = sphi 0, %s125
      %s128 = sphi 0, %s127
      %s142 = sphi 0, %s128
      %s150 = sphi 0, %s152
      %s153 = sphi 0, %s150
      %s154 = sphi 0, %s153
      %s170 = sphi 0, %s154
    $region4: #{tpu_custom_call.1} parent=1 // loop_header_branch
      %17 = sbr.rel (%p15) target = $region8
    $region5: #{tpu_custom_call.1} parent=1 // loop_body
      %s19 = ssub.s32 %s14, 1
      %s20 = ssub.s32 %s14, 2
      %s27 = sadd.s32 1, %s22
      %p28 = scmp.ge.s32.totalorder %s27, 1
      %s29 = scalar_select %p28, 0, %s27
      %s30 = sadd.s32 1, %s21
      %s31 = scalar_select %p28, %s30, %s21
      %p32 = scmp.ge.s32.totalorder %s31, 2
      %s33 = scalar_select %p32, 0, %s31
      %s34 = ssub.s32 %s21, %s33
      %s35 = ssub.s32 %s22, %s29
      %s36 = sor.u32 %s34, %s35
      %p37 = scmp.eq.s32.totalorder %s36, 0
      %s39 = sadd.s32 %s38, 1
      %s40 = scalar_select %p37, %s38, %s39
      %p43 = pneg %p37
      %p44 = scmp.eq.s32.totalorder %s14, 1
      %p45 = por %p43, %p44
      %p46 = scmp.ne.s32.totalorder %s38, %s41
      %p47 = scmp.eq.s32.totalorder %s14, 0
      %p48 = por %p46, %p47
      %p49 = scmp.ne.s32.totalorder %s38, %s41
      %p50 = scmp.eq.s32.totalorder %s19, 1
      %p51 = por %p49, %p50
      %p52 = scmp.ne.s32.totalorder %s41, %s42
      %p53 = scmp.eq.s32.totalorder %s19, 0
      %p54 = por %p52, %p53
      %p55 = scmp.ne.s32.totalorder %s41, %s42
      %p56 = scmp.eq.s32.totalorder %s20, 1
      %p57 = por %p55, %p56
      %p59 = scmp.ne.s32.totalorder %s42, %s58
      %p60 = scmp.eq.s32.totalorder %s20, 0
      %p61 = por %p59, %p60
      %s63 = sadd.s32 %s62, 1
      %p66 = scmp.eq.s32.totalorder %s14, 1
      %p67 = scmp.ne.s32.totalorder %s62, %s64
      %p68 = scmp.eq.s32.totalorder %s14, 0
      %p69 = por %p67, %p68
      %p70 = scmp.ne.s32.totalorder %s62, %s64
      %p71 = scmp.eq.s32.totalorder %s19, 1
      %p72 = por %p70, %p71
      %p73 = scmp.ne.s32.totalorder %s64, %s65
      %p74 = scmp.eq.s32.totalorder %s19, 0
      %p75 = por %p73, %p74
      %p76 = scmp.ne.s32.totalorder %s64, %s65
      %p77 = scmp.eq.s32.totalorder %s20, 1
      %p78 = por %p76, %p77
      %p80 = scmp.ne.s32.totalorder %s65, %s79
      %p81 = scmp.eq.s32.totalorder %s20, 0
      %p82 = por %p80, %p81
      %s84 = sadd.s32 %s83, 1
      %p87 = scmp.eq.s32.totalorder %s14, 1
      %p88 = scmp.ne.s32.totalorder %s83, %s85
      %p89 = scmp.eq.s32.totalorder %s14, 0
      %p90 = por %p88, %p89
      %p91 = scmp.ne.s32.totalorder %s83, %s85
      %p92 = scmp.eq.s32.totalorder %s19, 1
      %p93 = por %p91, %p92
      %p94 = scmp.ne.s32.totalorder %s85, %s86
      %p95 = scmp.eq.s32.totalorder %s19, 0
      %p96 = por %p94, %p95
      %p97 = scmp.ne.s32.totalorder %s85, %s86
      %p98 = scmp.eq.s32.totalorder %s20, 1
      %p99 = por %p97, %p98
      %p101 = scmp.ne.s32.totalorder %s86, %s100
      %p102 = scmp.eq.s32.totalorder %s20, 0
      %p103 = por %p101, %p102
      %s105 = sadd.s32 %s104, 1
      %p108 = scmp.eq.s32.totalorder %s14, 1
      %p109 = scmp.ne.s32.totalorder %s104, %s106
      %p110 = scmp.eq.s32.totalorder %s14, 0
      %p111 = por %p109, %p110
      %p112 = scmp.ne.s32.totalorder %s104, %s106
      %p113 = scmp.eq.s32.totalorder %s19, 1
      %p114 = por %p112, %p113
      %p115 = scmp.ne.s32.totalorder %s106, %s107
      %p116 = scmp.eq.s32.totalorder %s19, 0
      %p117 = por %p115, %p116
      %p118 = scmp.ne.s32.totalorder %s106, %s107
      %p119 = scmp.eq.s32.totalorder %s20, 1
      %p120 = por %p118, %p119
      %p122 = scmp.ne.s32.totalorder %s107, %s121
      %p123 = scmp.eq.s32.totalorder %s20, 0
      %p124 = por %p122, %p123
      %s126 = sadd.s32 %s125, 1
      %p129 = scmp.eq.s32.totalorder %s14, 1
      %p130 = scmp.ne.s32.totalorder %s125, %s127
      %p131 = scmp.eq.s32.totalorder %s14, 0
      %p132 = por %p130, %p131
      %p133 = scmp.ne.s32.totalorder %s125, %s127
      %p134 = scmp.eq.s32.totalorder %s19, 1
      %p135 = por %p133, %p134
      %p136 = scmp.ne.s32.totalorder %s127, %s128
      %p137 = scmp.eq.s32.totalorder %s19, 0
      %p138 = por %p136, %p137
      %p139 = scmp.ne.s32.totalorder %s127, %s128
      %p140 = scmp.eq.s32.totalorder %s20, 1
      %p141 = por %p139, %p140
      %p143 = scmp.ne.s32.totalorder %s128, %s142
      %p144 = scmp.eq.s32.totalorder %s20, 0
      %p145 = por %p143, %p144
      %s146 = ssub.s32 %s21, %s33
      %s147 = ssub.s32 %s22, %s29
      %s148 = sor.u32 %s146, %s147
      %p149 = scmp.eq.s32.totalorder %s148, 0
      %s151 = sadd.s32 %s150, 1
      %s152 = scalar_select %p149, %s150, %s151
      %p155 = pneg %p149
      %p156 = scmp.eq.s32.totalorder %s14, 1
      %p157 = por %p155, %p156
      %p158 = scmp.ne.s32.totalorder %s150, %s153
      %p159 = scmp.eq.s32.totalorder %s14, 0
      %p160 = por %p158, %p159
      %p161 = scmp.ne.s32.totalorder %s150, %s153
      %p162 = scmp.eq.s32.totalorder %s19, 1
      %p163 = por %p161, %p162
      %p164 = scmp.ne.s32.totalorder %s153, %s154
      %p165 = scmp.eq.s32.totalorder %s19, 0
      %p166 = por %p164, %p165
      %p167 = scmp.ne.s32.totalorder %s153, %s154
      %p168 = scmp.eq.s32.totalorder %s20, 1
      %p169 = por %p167, %p168
      %p171 = scmp.ne.s32.totalorder %s154, %s170
      %p172 = scmp.eq.s32.totalorder %s20, 0
      %p173 = por %p171, %p172
      %p174 = scmp.le.s32.totalorder 1, %s14
      %p175 = scmp.lt.s32.totalorder %s14, 3
      %p176 = pnand %p174, %p175
      %p177 = pneg %p176
      // Predicated region
      $region9: #{tpu_custom_call.1} parent=5 // pred_check
        _
      $region10: #{tpu_custom_call.1} parent=5 // pred_check_branch
        %179 = sbr.rel (%p176) target = $region12
      $region11: #{tpu_custom_call.1} parent=5 // pred_region
        %s180 = ssub.s32 %s14, 1
        // Predicated region
        $region13: #{tpu_custom_call.1} parent=11 // pred_check
          %p181 = pneg %p75
        $region14: #{tpu_custom_call.1} parent=11 // pred_check_branch
          %183 = sbr.rel (%p181) target = $region16
        $region15: #{tpu_custom_call.1} parent=11 // pred_region
          _
        $region16: #{tpu_custom_call.1} parent=11 // pred_fallthru
          _
        // Predicated region
        $region17: #{tpu_custom_call.1} parent=11 // pred_check
          %p184 = pneg %p96
        $region18: #{tpu_custom_call.1} parent=11 // pred_check_branch
          %186 = sbr.rel (%p184) target = $region20
        $region19: #{tpu_custom_call.1} parent=11 // pred_region
          _
        $region20: #{tpu_custom_call.1} parent=11 // pred_fallthru
          _
        // Predicated region
        $region21: #{tpu_custom_call.1} parent=11 // pred_check
          %p187 = pneg %p117
        $region22: #{tpu_custom_call.1} parent=11 // pred_check_branch
          %189 = sbr.rel (%p187) target = $region24
        $region23: #{tpu_custom_call.1} parent=11 // pred_region
          _
        $region24: #{tpu_custom_call.1} parent=11 // pred_fallthru
          _
        // Predicated region
        $region25: #{tpu_custom_call.1} parent=11 // pred_check
          %p190 = pneg %p138
        $region26: #{tpu_custom_call.1} parent=11 // pred_check_branch
          %192 = sbr.rel (%p190) target = $region28
        $region27: #{tpu_custom_call.1} parent=11 // pred_region
          _
        $region28: #{tpu_custom_call.1} parent=11 // pred_fallthru
          _
      $region12: #{tpu_custom_call.1} parent=5 // pred_fallthru
        _
      %p193 = scmp.lt.s32.totalorder %s14, 2
      // Predicated region
      $region29: #{tpu_custom_call.1} parent=5 // pred_check
        %p194 = pneg %p193
      $region30: #{tpu_custom_call.1} parent=5 // pred_check_branch
        %196 = sbr.rel (%p194) target = $region32
      $region31: #{tpu_custom_call.1} parent=5 // pred_region
        // Predicated region
        $region33: #{tpu_custom_call.1} parent=31 // pred_check
          %p197 = pneg %p48
        $region34: #{tpu_custom_call.1} parent=31 // pred_check_branch
          %199 = sbr.rel (%p197) target = $region36
        $region35: #{tpu_custom_call.1} parent=31 // pred_region
          %s200 = smul.u32 2, %s22
          %p201 = scmp.lt.s32.totalorder %s21, 1
          %s202 = scalar_select %p201, %s21, 1
          %p203 = scmp.lt.s32.totalorder %s200, 1
          %s204 = scalar_select %p203, %s200, 1
          %s205 = smul.addr %s202, 8
          %s206 = sadd.s32 %s204, %s205
          %s207 = smul.addr %s206, 8
          %s208 = scalar_lea.vmem %s0, %s207
          %s209 = smul.u32 2, %s22
        $region36: #{tpu_custom_call.1} parent=31 // pred_fallthru
          _
      $region32: #{tpu_custom_call.1} parent=5 // pred_fallthru
        _
      %p210 = scmp.le.s32.totalorder 1, %s14
      %p211 = scmp.lt.s32.totalorder %s14, 3
      %p212 = pnand %p210, %p211
      %p213 = pneg %p212
      // Predicated region
      $region37: #{tpu_custom_call.1} parent=5 // pred_check
        _
      $region38: #{tpu_custom_call.1} parent=5 // pred_check_branch
        %215 = sbr.rel (%p212) target = $region40
      $region39: #{tpu_custom_call.1} parent=5 // pred_region
        %s216 = ssub.s32 %s14, 1
        %s217 = smul.u32 2, %s24
        %p218 = scmp.lt.s32.totalorder %s23, 1
        %s219 = scalar_select %p218, %s23, 1
        %p220 = scmp.lt.s32.totalorder %s217, 1
        %s221 = scalar_select %p220, %s217, 1
        %s222 = smul.addr %s219, 8
        %s223 = sadd.s32 %s221, %s222
        %s224 = smul.addr %s223, 8
        %s225 = scalar_lea.vmem %s0, %s224
        %p226 = pneg %p54
        %p227 = pneg %p51
        %p228 = pneg %p75
        %p229 = pneg %p72
        %p230 = pneg %p96
        %p231 = pneg %p93
        %p232 = pneg %p117
        %p233 = pneg %p114
        %p234 = pneg %p138
        %p235 = pneg %p135
        %p236 = pneg %p166
        %p237 = pneg %p163
        %s238 = sand.u32 %s153, 1
        %s239 = scalar_lea.sflag [#allocation3], %s238
        %s240 = sand.u32 %s153, 1
        %s241 = smul.addr %s240, 64
        %s242 = scalar_lea.vmem [#allocation2], %s241
        %s243 = smul.u32 2, %s24
        %p244 = scmp.lt.s32.totalorder %s23, 1
        %s245 = scalar_select %p244, %s23, 1
        %p246 = scmp.lt.s32.totalorder %s243, 1
        %s247 = scalar_select %p246, %s243, 1
        %s248 = smul.addr %s245, 8
        %s249 = sadd.s32 %s247, %s248
        %s250 = smul.addr %s249, 8
        %s251 = scalar_lea.vmem %s0, %s250
        %s252 = smul.u32 2, %s24
        %s253 = smul.u32 2, %s24
        %v255 = vld [vmem:[%s251] sm:$0xff]
        %v256 = vld [vmem:[%s251 + $0x8] sm:$0xff]
        %v257 = vld [vmem:[%s251 + $0x10] sm:$0xff]
        %v258 = vld [vmem:[%s251 + $0x18] sm:$0xff]
        %v259 = vld [vmem:[%s251 + $0x20] sm:$0xff]
        %v260 = vld [vmem:[%s251 + $0x28] sm:$0xff]
        %v261 = vld [vmem:[%s251 + $0x30] sm:$0xff]
        %v262 = vld [vmem:[%s251 + $0x38] sm:$0xff]
        %v263 = vpack.c.bf16 %v257, %v255
        %v264 = vpack.c.bf16 %v258, %v256
        %v265 = vpack.c.bf16 %v261, %v259
        %v266 = vpack.c.bf16 %v262, %v260
        %v267 = vld [vmem:[%s1] sm:$0xf]
        %v268 = vld [vmem:[%s1 + $0x4] sm:$0xf]
        %v269 = vld [vmem:[%s1 + $0x8] sm:$0xf]
        %v270 = vld [vmem:[%s1 + $0xc] sm:$0xf]
        %v271 = vld [vmem:[%s1 + $0x10] sm:$0xf]
        %v272 = vld [vmem:[%s1 + $0x14] sm:$0xf]
        %v273 = vld [vmem:[%s1 + $0x18] sm:$0xf]
        %v274 = vld [vmem:[%s1 + $0x1c] sm:$0xf]
        %v275 = vld [vmem:[%s2] sm:$0xff]
        %v276 = vld [vmem:[%s2 + $0x8] sm:$0xff]
        %v277 = vld [vmem:[%s2 + $0x10] sm:$0xff]
        %v278 = vld [vmem:[%s2 + $0x18] sm:$0xff]
        %v279 = vld [vmem:[%s2 + $0x20] sm:$0xff]
        %v280 = vld [vmem:[%s2 + $0x28] sm:$0xff]
        %v281 = vld [vmem:[%s2 + $0x30] sm:$0xff]
        %v282 = vld [vmem:[%s2 + $0x38] sm:$0xff]
        %284 = vset.pattern.permute.xlu0 0
        %285 = vperm.xlu0 %284, %v275
        %v286 = vpop.permute.xlu0 %285
        %289 = vset.pattern.permute.xlu0 0
        %290 = vperm.xlu0 %289, %v276
        %v291 = vpop.permute.xlu0 %290
        %294 = vset.pattern.permute.xlu0 0
        %295 = vperm.xlu0 %294, %v277
        %v296 = vpop.permute.xlu0 %295
        %299 = vset.pattern.permute.xlu0 0
        %300 = vperm.xlu0 %299, %v278
        %v301 = vpop.permute.xlu0 %300
        %304 = vset.pattern.permute.xlu0 0
        %305 = vperm.xlu0 %304, %v279
        %v306 = vpop.permute.xlu0 %305
        %309 = vset.pattern.permute.xlu0 0
        %310 = vperm.xlu0 %309, %v280
        %v311 = vpop.permute.xlu0 %310
        %314 = vset.pattern.permute.xlu0 0
        %315 = vperm.xlu0 %314, %v281
        %v316 = vpop.permute.xlu0 %315
        %319 = vset.pattern.permute.xlu0 0
        %320 = vperm.xlu0 %319, %v282
        %v321 = vpop.permute.xlu0 %320
        %v331 = vunpack.c.l.b16 %v267
        %v332 = vunpack.c.l.b16 %v268
        %v333 = vunpack.c.l.b16 %v269
        %v334 = vunpack.c.l.b16 %v270
        %v335 = vunpack.c.l.b16 %v271
        %v336 = vunpack.c.l.b16 %v272
        %v337 = vunpack.c.l.b16 %v273
        %v338 = vunpack.c.l.b16 %v274
        %v339 = vpack.c.b16 %v332, %v331
        %v340 = vpack.c.b16 %v334, %v333
        %v341 = vpack.c.b16 %v336, %v335
        %v342 = vpack.c.b16 %v338, %v337
        %vm343 = vcmask 261120
        %v345 = vsel %vm343, %v339, 0
        %v348 = vsel %vm343, %v340, 0
        %v351 = vsel %vm343, %v341, 0
        %v354 = vsel %vm343, %v342, 0
        %356 = vmatprep.subr.bf16.mxu0 %v264
        %357 = vmatpush1.bf16.msra.mxu0 %v263
        %358 = vmatprep.subr.bf16.mxu0 %v266
        %359 = vmatpush1.bf16.msra.mxu0 %v265
        %360 = vmatprep.subr.bf16.mxu0 0
        %361 = vmatpush1.bf16.msra.mxu0 0
        %362 = vmatprep.subr.bf16.mxu0 0
        %363 = vmatpush1.bf16.msra.mxu0 0
        %364 = vmatprep.subr.bf16.mxu0 0
        %365 = vmatpush1.bf16.msra.mxu0 0
        %366 = vmatprep.subr.bf16.mxu0 0
        %367 = vmatpush1.bf16.msra.mxu0 0
        %368 = vmatprep.subr.bf16.mxu0 0
        %369 = vmatpush1.bf16.msra.mxu0 0
        %370 = vmatprep.subr.bf16.mxu0 0
        %371 = vmatpush1.bf16.msra.mxu0 0
        %372 = vmatprep.subr.bf16.mxu0 0
        %373 = vmatpush1.bf16.msra.mxu0 0
        %374 = vmatprep.subr.bf16.mxu0 0
        %375 = vmatpush1.bf16.msra.mxu0 0
        %376 = vmatprep.subr.bf16.mxu0 0
        %377 = vmatpush1.bf16.msra.mxu0 0
        %378 = vmatprep.subr.bf16.mxu0 0
        %379 = vmatpush1.bf16.msra.mxu0 0
        %380 = vmatprep.subr.bf16.mxu0 0
        %381 = vmatpush1.bf16.msra.mxu0 0
        %382 = vmatprep.subr.bf16.mxu0 0
        %383 = vmatpush1.bf16.msra.mxu0 0
        %384 = vmatprep.subr.bf16.mxu0 0
        %385 = vmatpush1.bf16.msra.mxu0 0
        %386 = vmatprep.subr.bf16.mxu0 0
        %387 = vmatpush1.bf16.msra.mxu0 0
        %388 = vmatprep.mubr.bf16.mxu0 0
        %389 = vmatmul.mubr.bf16.gmra.mrb[0].mxu0 %v345
        %v390 = vpop.f32.mrb[0].mxu0
        %v391 = vadd.f32 %v286, %v390
        %v392 = vpop.f32.mrb[0].mxu0
        %v393 = vadd.f32 %v286, %v392
        %v394 = vpop.f32.mrb[0].mxu0
        %v395 = vadd.f32 %v291, %v394
        %v396 = vpop.f32.mrb[0].mxu0
        %v397 = vadd.f32 %v291, %v396
        %398 = vmatprep.mubr.bf16.mxu0 0
        %399 = vmatmul.mubr.bf16.gmra.mrb[0].mxu0 %v348
        %v400 = vpop.f32.mrb[0].mxu0
        %v401 = vadd.f32 %v296, %v400
        %v402 = vpop.f32.mrb[0].mxu0
        %v403 = vadd.f32 %v296, %v402
        %v404 = vpop.f32.mrb[0].mxu0
        %v405 = vadd.f32 %v301, %v404
        %v406 = vpop.f32.mrb[0].mxu0
        %v407 = vadd.f32 %v301, %v406
        %408 = vmatprep.mubr.bf16.mxu0 0
        %409 = vmatmul.mubr.bf16.gmra.mrb[0].mxu0 %v351
        %v410 = vpop.f32.mrb[0].mxu0
        %v411 = vadd.f32 %v306, %v410
        %v412 = vpop.f32.mrb[0].mxu0
        %v413 = vadd.f32 %v306, %v412
        %v414 = vpop.f32.mrb[0].mxu0
        %v415 = vadd.f32 %v311, %v414
        %v416 = vpop.f32.mrb[0].mxu0
        %v417 = vadd.f32 %v311, %v416
        %418 = vmatprep.mubr.bf16.mxu0 0
        %419 = vmatmul.mubr.bf16.gmra.mrb[0].mxu0 %v354
        %v420 = vpop.f32.mrb[0].mxu0
        %v421 = vadd.f32 %v316, %v420
        %v422 = vpop.f32.mrb[0].mxu0
        %v423 = vadd.f32 %v316, %v422
        %v424 = vpop.f32.mrb[0].mxu0
        %v425 = vadd.f32 %v321, %v424
        %v426 = vpop.f32.mrb[0].mxu0
        %v427 = vadd.f32 %v321, %v426
        %428 = vdwg.mxu0
        %v429 = vxor.u32 %v411, 2147483648
        %v430 = vxor.u32 %v413, 2147483648
        %v431 = vxor.u32 %v415, 2147483648
        %v432 = vxor.u32 %v417, 2147483648
        %v433 = vxor.u32 %v421, 2147483648
        %v434 = vxor.u32 %v423, 2147483648
        %v435 = vxor.u32 %v425, 2147483648
        %v436 = vxor.u32 %v427, 2147483648
        %v437 = vmul.f32 %v429, 1.442695
        %v438 = vpow.pop %v437
        %v439 = vmul.f32 %v430, 1.442695
        %v440 = vpow.pop %v439
        %v441 = vmul.f32 %v431, 1.442695
        %v442 = vpow.pop %v441
        %v443 = vmul.f32 %v432, 1.442695
        %v444 = vpow.pop %v443
        %v445 = vmul.f32 %v433, 1.442695
        %v446 = vpow.pop %v445
        %v447 = vmul.f32 %v434, 1.442695
        %v448 = vpow.pop %v447
        %v449 = vmul.f32 %v435, 1.442695
        %v450 = vpow.pop %v449
        %v451 = vmul.f32 %v436, 1.442695
        %v452 = vpow.pop %v451
        %v453 = vadd.f32 %v438, 1.0
        %v454 = vadd.f32 %v440, 1.0
        %v455 = vadd.f32 %v442, 1.0
        %v456 = vadd.f32 %v444, 1.0
        %v457 = vadd.f32 %v446, 1.0
        %v458 = vadd.f32 %v448, 1.0
        %v459 = vadd.f32 %v450, 1.0
        %v460 = vadd.f32 %v452, 1.0
        %v461 = vrcp.pop %v453
        %v462 = vmul.f32 1.0, %v461
        %v463 = vrcp.pop %v454
        %v464 = vmul.f32 1.0, %v463
        %v465 = vrcp.pop %v455
        %v466 = vmul.f32 1.0, %v465
        %v467 = vrcp.pop %v456
        %v468 = vmul.f32 1.0, %v467
        %v469 = vrcp.pop %v457
        %v470 = vmul.f32 1.0, %v469
        %v471 = vrcp.pop %v458
        %v472 = vmul.f32 1.0, %v471
        %v473 = vrcp.pop %v459
        %v474 = vmul.f32 1.0, %v473
        %v475 = vrcp.pop %v460
        %v476 = vmul.f32 1.0, %v475
        %v477 = vmul.f32 %v391, %v462
        %v478 = vmul.f32 %v393, %v464
        %v479 = vmul.f32 %v395, %v466
        %v480 = vmul.f32 %v397, %v468
        %v481 = vmul.f32 %v401, %v470
        %v482 = vmul.f32 %v403, %v472
        %v483 = vmul.f32 %v405, %v474
        %v484 = vmul.f32 %v407, %v476
        %v485 = vld [vmem:[%s3] sm:$0xf]
        %v486 = vld [vmem:[%s3 + $0x4] sm:$0xf]
        %v487 = vld [vmem:[%s3 + $0x8] sm:$0xf]
        %v488 = vld [vmem:[%s3 + $0xc] sm:$0xf]
        %v489 = vpack.c.bf16 %v479, %v477
        %v490 = vpack.c.bf16 %v480, %v478
        %v491 = vpack.c.bf16 %v483, %v481
        %v492 = vpack.c.bf16 %v484, %v482
        %v493 = vld [vmem:[%s4] sm:$0xff]
        %v494 = vld [vmem:[%s4 + $0x8] sm:$0xff]
        %v495 = vld [vmem:[%s4 + $0x10] sm:$0xff]
        %v496 = vld [vmem:[%s4 + $0x18] sm:$0xff]
        %498 = vset.pattern.permute.xlu0 0
        %499 = vperm.xlu0 %498, %v493
        %v500 = vpop.permute.xlu0 %499
        %503 = vset.pattern.permute.xlu0 0
        %504 = vperm.xlu0 %503, %v494
        %v505 = vpop.permute.xlu0 %504
        %508 = vset.pattern.permute.xlu0 0
        %509 = vperm.xlu0 %508, %v495
        %v510 = vpop.permute.xlu0 %509
        %513 = vset.pattern.permute.xlu0 0
        %514 = vperm.xlu0 %513, %v496
        %v515 = vpop.permute.xlu0 %514
        %v521 = vunpack.c.l.b16 %v485
        %v522 = vunpack.c.l.b16 %v486
        %v523 = vunpack.c.l.b16 %v487
        %v524 = vunpack.c.l.b16 %v488
        %v525 = vpack.c.b16 %v522, %v521
        %v526 = vpack.c.b16 %v524, %v523
        %v528 = vsel %vm343, %v525, 0
        %v531 = vsel %vm343, %v526, 0
        %533 = vmatprep.subr.bf16.mxu0 %v490
        %534 = vmatpush1.bf16.msra.mxu0 %v489
        %535 = vmatprep.subr.bf16.mxu0 %v492
        %536 = vmatpush1.bf16.msra.mxu0 %v491
        %537 = vmatprep.subr.bf16.mxu0 0
        %538 = vmatpush1.bf16.msra.mxu0 0
        %539 = vmatprep.subr.bf16.mxu0 0
        %540 = vmatpush1.bf16.msra.mxu0 0
        %541 = vmatprep.subr.bf16.mxu0 0
        %542 = vmatpush1.bf16.msra.mxu0 0
        %543 = vmatprep.subr.bf16.mxu0 0
        %544 = vmatpush1.bf16.msra.mxu0 0
        %545 = vmatprep.subr.bf16.mxu0 0
        %546 = vmatpush1.bf16.msra.mxu0 0
        %547 = vmatprep.subr.bf16.mxu0 0
        %548 = vmatpush1.bf16.msra.mxu0 0
        %549 = vmatprep.subr.bf16.mxu0 0
        %550 = vmatpush1.bf16.msra.mxu0 0
        %551 = vmatprep.subr.bf16.mxu0 0
        %552 = vmatpush1.bf16.msra.mxu0 0
        %553 = vmatprep.subr.bf16.mxu0 0
        %554 = vmatpush1.bf16.msra.mxu0 0
        %555 = vmatprep.subr.bf16.mxu0 0
        %556 = vmatpush1.bf16.msra.mxu0 0
        %557 = vmatprep.subr.bf16.mxu0 0
        %558 = vmatpush1.bf16.msra.mxu0 0
        %559 = vmatprep.subr.bf16.mxu0 0
        %560 = vmatpush1.bf16.msra.mxu0 0
        %561 = vmatprep.subr.bf16.mxu0 0
        %562 = vmatpush1.bf16.msra.mxu0 0
        %563 = vmatprep.subr.bf16.mxu0 0
        %564 = vmatpush1.bf16.msra.mxu0 0
        %565 = vmatprep.mubr.bf16.mxu0 0
        %566 = vmatmul.mubr.bf16.gmra.mrb[0].mxu0 %v528
        %v567 = vpop.f32.mrb[0].mxu0
        %v568 = vadd.f32 %v500, %v567
        %v569 = vpop.f32.mrb[0].mxu0
        %v570 = vadd.f32 %v500, %v569
        %v571 = vpop.f32.mrb[0].mxu0
        %v572 = vadd.f32 %v505, %v571
        %v573 = vpop.f32.mrb[0].mxu0
        %v574 = vadd.f32 %v505, %v573
        %575 = vmatprep.mubr.bf16.mxu0 0
        %576 = vmatmul.mubr.bf16.gmra.mrb[0].mxu0 %v531
        %v577 = vpop.f32.mrb[0].mxu0
        %v578 = vadd.f32 %v510, %v577
        %v579 = vpop.f32.mrb[0].mxu0
        %v580 = vadd.f32 %v510, %v579
        %v581 = vpop.f32.mrb[0].mxu0
        %v582 = vadd.f32 %v515, %v581
        %v583 = vpop.f32.mrb[0].mxu0
        %v584 = vadd.f32 %v515, %v583
        %585 = vdwg.mxu0
        %586 = vst [vmem:[%s242] sm:$0xff] %v568
        %587 = vst [vmem:[%s242 + $0x8] sm:$0xff] %v570
        %588 = vst [vmem:[%s242 + $0x10] sm:$0xff] %v572
        %589 = vst [vmem:[%s242 + $0x18] sm:$0xff] %v574
        %590 = vst [vmem:[%s242 + $0x20] sm:$0xff] %v578
        %591 = vst [vmem:[%s242 + $0x28] sm:$0xff] %v580
        %592 = vst [vmem:[%s242 + $0x30] sm:$0xff] %v582
        %593 = vst [vmem:[%s242 + $0x38] sm:$0xff] %v584
        %s594 = sand.u32 %s153, 1
        %s595 = scalar_lea.sflag [#allocation3], %s594
        %s596 = sand.u32 %s153, 1
        %s597 = smul.addr %s596, 64
        %s598 = scalar_lea.vmem [#allocation2], %s597
        // Predicated region
        $region41: #{tpu_custom_call.1} parent=39 // pred_check
          %p599 = pneg %p163
        $region42: #{tpu_custom_call.1} parent=39 // pred_check_branch
          %601 = sbr.rel (%p599) target = $region44
        $region43: #{tpu_custom_call.1} parent=39 // pred_region
          %s602 = smul.u32 2, %s24
          %s604 = ssub.s32 1024, 1024
          %605 = vsyncadd %s595, %s604
          %s606 = smul.addr %s23, 8
          %s607 = sadd.s32 %s602, %s606
          %s608 = smul.addr %s607, 128
          %s609 = scalar_lea.hbm %s5, %s608
          %s610 = sshll.u32 %s598, 4
          %s611 = int_to_ptr.vmem [resolvable:$true] %s610
          %616 = dma.vmem_to_hbm [thread:$0]  %s611, 1024, %s609, %s595, 256, 256, 16
        $region44: #{tpu_custom_call.1} parent=39 // pred_fallthru
          _
      $region40: #{tpu_custom_call.1} parent=5 // pred_fallthru
        _
      %p617 = scmp.le.s32.totalorder 2, %s14
      // Predicated region
      $region45: #{tpu_custom_call.1} parent=5 // pred_check
        %p618 = pneg %p617
      $region46: #{tpu_custom_call.1} parent=5 // pred_check_branch
        %620 = sbr.rel (%p618) target = $region48
      $region47: #{tpu_custom_call.1} parent=5 // pred_region
        %s621 = ssub.s32 %s14, 2
        // Predicated region
        $region49: #{tpu_custom_call.1} parent=47 // pred_check
          %p622 = pneg %p169
        $region50: #{tpu_custom_call.1} parent=47 // pred_check_branch
          %624 = sbr.rel (%p622) target = $region52
        $region51: #{tpu_custom_call.1} parent=47 // pred_region
          %s625 = sand.u32 %s154, 1
          %s626 = scalar_lea.sflag [#allocation3], %s625
          %s627 = sand.u32 %s154, 1
          %s628 = smul.addr %s627, 64
          %s629 = scalar_lea.vmem [#allocation2], %s628
          %630 = dma.done %s626, 1024
        $region52: #{tpu_custom_call.1} parent=47 // pred_fallthru
          _
      $region48: #{tpu_custom_call.1} parent=5 // pred_fallthru
        _
    $region6: #{tpu_custom_call.1} parent=1 // loop_footer
      %s18 = sadd.s32 1, %s14
    $region7: #{tpu_custom_call.1} parent=1 // loop_footer_branch
      %13 = sbr.rel target = $region3
    $region8: #{tpu_custom_call.1} parent=1 // loop_exit
      _
    %631 = vsyncpa [#allocation3], 1
    %s632 = scalar_lea.sflag [#allocation3], 1
    %633 = vsyncpa %s632, 1

</llo_original>
